<compile_context>
chip_gen: v7x
topology: tpu7x:2x2x1
jax: 0.10.0
libtpu: 0.0.40
codegen_flags: <defaults>
</compile_context>

<pallas_src>
import functools

import jax
import jax.numpy as jnp
from jax.experimental import pallas as pl
from jax.experimental.pallas import tpu as pltpu


def _round_up(x, m):
    return (x + m - 1) // m * m


def _device_vmem_bytes():
    """Physical VMEM per TensorCore; conservative 64 MiB (v7x) fallback."""
    try:
        cap = getattr(pltpu.get_tpu_info(), "vmem_capacity_bytes", None)
        if cap:
            return int(cap)
    except Exception:
        pass
    return 64 << 20


def _choose_t_hw(hw_pad, c, tb, x_itemsize, target_bytes=10 << 20):
    """Largest multiple-of-128 divisor of hw_pad whose HARDWARE-PADDED
    (tb, C, t_hw) block (C sublane-padded to 8) stays under target_bytes,
    preferring >= 3 HW grid steps so the pipeline has steps to overlap."""
    per_lane = tb * _round_up(c, 8) * x_itemsize
    cands = [t for t in range(128, hw_pad + 1, 128) if hw_pad % t == 0]
    fitting = [t for t in cands if per_lane * t <= target_bytes]
    if not fitting:
        return 128
    stepped = [t for t in fitting if hw_pad // t >= 3]
    return max(stepped) if stepped else max(fitting)


def _dp_fsl_kernel(x_ref, wfe_ref, whead_t_ref, bhead_ref, out_ref, acc_ref,
                   *, inv_hw, n_lane_groups):
    """Fused surrogate-backbone + linear-head forward (one (b, hw) grid step).

    x_ref       : (tb, C, t_hw)   f32/bf16 VMEM  streamed input block
    wfe_ref     : (C, D_pad)      bf16     VMEM  surrogate feature projection
    whead_t_ref : (D_pad, NC_pad) bf16     VMEM  head weight, pre-T + padded
    bhead_ref   : (1, NC_pad)     f32      VMEM  head bias, padded
    out_ref     : (tb, NC_pad)    f32      VMEM  padded logits
    acc_ref     : (tb, C, 128)    f32      VMEM  running lane-parallel spatial sum
    """
    hw = pl.program_id(1)

    @pl.when(hw == 0)
    def _init():
        acc_ref[...] = jnp.zeros_like(acc_ref)

    # Lane-parallel VPU accumulation: fold the 128-lane groups of this spatial
    # tile into a register-resident partial (static 128-aligned lane slices ->
    # pure vld + vadd, no per-step XLU reduce or relayout), then update the
    # VMEM accumulator once per grid step.
    partial = x_ref[:, :, 0:128].astype(jnp.float32)
    for g in range(1, n_lane_groups):
        partial = partial + x_ref[:, :, g * 128:(g + 1) * 128].astype(jnp.float32)
    acc_ref[...] += partial

    @pl.when(hw == pl.num_programs(1) - 1)
    def _finalize():
        # Single cross-lane reduce + GAP scale, once per batch tile.
        pooled = jnp.sum(acc_ref[...], axis=-1) * inv_hw                 # (tb, C)
        # Surrogate feature projection (MXU, bf16 operands, f32 accumulate).
        feat = jnp.dot(pooled.astype(jnp.bfloat16), wfe_ref[...],
                       preferred_element_type=jnp.float32)               # (tb, D_pad)
        # nn.Linear head: logits = feat @ W.T + b (W, b zero-init in the module).
        logits = jnp.dot(feat.astype(jnp.bfloat16), whead_t_ref[...],
                         preferred_element_type=jnp.float32)             # (tb, NC_pad)
        out_ref[...] = (logits + bhead_ref[...]).astype(out_ref.dtype)


def prepare_dp_fsl_params(w_fe, w_head, b_head):
    """One-time padding / bf16 cast of weights (call OUTSIDE the hot path).

    w_fe   : (C, D)            surrogate backbone projection
    w_head : (num_classes, D)  PyTorch nn.Linear layout
    b_head : (num_classes,)
    """
    C, D = w_fe.shape
    nc, D2 = w_head.shape
    assert D2 == D
    D_pad = _round_up(D, 128)
    NC_pad = _round_up(nc, 128)
    w_fe_p = jnp.zeros((C, D_pad), jnp.bfloat16).at[:, :D].set(
        w_fe.astype(jnp.bfloat16))
    w_head_t_p = jnp.zeros((D_pad, NC_pad), jnp.bfloat16).at[:D, :nc].set(
        w_head.T.astype(jnp.bfloat16))
    b_head_p = jnp.zeros((1, NC_pad), jnp.float32).at[:, :nc].set(
        b_head.astype(jnp.float32).reshape(1, nc))
    return w_fe_p, w_head_t_p, b_head_p


def dp_fsl_linear_forward(x_nchw, w_fe_p, w_head_t_p, b_head_p, num_classes,
                          *, tb=None, t_hw=None):
    """NCHW image -> class logits (surrogate backbone + zero-init head).

    x_nchw     : (B, C, H, W) f32 or bf16 (bf16 halves the dominant HBM traffic)
    w_fe_p     : (C, D_pad)        bf16  (from prepare_dp_fsl_params)
    w_head_t_p : (D_pad, NC_pad)   bf16
    b_head_p   : (1, NC_pad)       f32
    """
    B, C, H, W = x_nchw.shape
    HW = H * W
    C_w, D_pad = w_fe_p.shape
    assert C_w == C
    NC_pad = w_head_t_p.shape[1]

    x_itemsize = jnp.dtype(x_nchw.dtype).itemsize
    x = x_nchw.reshape(B, C, HW)

    # Pad HW to a 128 multiple with zeros (exact: GAP scale uses the true HW).
    HW_pad = _round_up(HW, 128)
    if HW_pad != HW:
        x = jnp.pad(x, ((0, 0), (0, 0), (0, HW_pad - HW)))

    # --- tile sizes -------------------------------------------------------
    # Batch tile: multiple of 8, small enough that B splits into >= 2
    # "parallel" programs whenever possible (v7x megacore), capped at 32 so
    # the (tb, C_pad8, 128) partial accumulator stays within the vreg budget.
    if tb is None:
        tb = max(8, min(32, _round_up((B + 1) // 2, 8)))
    B_pad = _round_up(B, tb)
    if B_pad != B:
        x = jnp.pad(x, ((0, B_pad - B), (0, 0), (0, 0)))

    if t_hw is None:
        t_hw = _choose_t_hw(HW_pad, C, tb, x_itemsize)
    assert HW_pad % t_hw == 0 and t_hw % 128 == 0, (HW_pad, t_hw)

    grid = (B_pad // tb, HW_pad // t_hw)

    # --- VMEM budget with hardware-padded block sizes ---------------------
    c_pad8 = _round_up(C, 8)
    x_blk_bytes = tb * c_pad8 * t_hw * x_itemsize            # (8,128)-padded block
    w_bytes = (_round_up(C, 16) * D_pad + D_pad * NC_pad) * 2 + 8 * NC_pad * 4
    out_blk_bytes = tb * NC_pad * 4
    acc_bytes = tb * c_pad8 * 128 * 4
    vmem_cap = _device_vmem_bytes()
    cap_minus_headroom = max(vmem_cap - (8 << 20), 32 << 20)

    cost = pl.CostEstimate(
        flops=2 * B_pad * (C * D_pad + D_pad * NC_pad) + B_pad * C * HW_pad,
        transcendentals=0,
        bytes_accessed=x_itemsize * B_pad * C * HW_pad
        + 2 * (C * D_pad + D_pad * NC_pad)
        + 4 * (NC_pad + B_pad * NC_pad),
    )

    kernel = functools.partial(_dp_fsl_kernel, inv_hw=1.0 / float(HW),
                               n_lane_groups=t_hw // 128)

    def _build(single_buffer_weights):
        # Resident weights/bias never change across the grid: single buffer
        # frees VMEM that is better spent on a larger t_hw.
        w_kw = ({"pipeline_mode": pl.Buffered(1)}
                if single_buffer_weights else {})
        n_w_buf = 1 if single_buffer_weights else 2
        vmem_limit = (2 * x_blk_bytes + n_w_buf * w_bytes
                      + 2 * out_blk_bytes + acc_bytes + (4 << 20))
        vmem_limit = int(min(max(vmem_limit, 4 << 20), cap_minus_headroom))
        return pl.pallas_call(
            kernel,
            out_shape=jax.ShapeDtypeStruct((B_pad, NC_pad), jnp.float32),
            grid_spec=pltpu.PrefetchScalarGridSpec(
                num_scalar_prefetch=0,
                grid=grid,
                in_specs=[
                    pl.BlockSpec((tb, C, t_hw), lambda b, h: (b, 0, h)),   # x stream
                    pl.BlockSpec((C, D_pad), lambda b, h: (0, 0), **w_kw),        # w_fe
                    pl.BlockSpec((D_pad, NC_pad), lambda b, h: (0, 0), **w_kw),   # w_head.T
                    pl.BlockSpec((1, NC_pad), lambda b, h: (0, 0), **w_kw),       # bias
                ],
                out_specs=pl.BlockSpec((tb, NC_pad), lambda b, h: (b, 0)),
                scratch_shapes=[pltpu.VMEM((tb, C, 128), jnp.float32)],
            ),
            compiler_params=pltpu.CompilerParams(
                dimension_semantics=("parallel", "arbitrary"),
                vmem_limit_bytes=vmem_limit,
            ),
            cost_estimate=cost,
        )

    try:
        out_padded = _build(True)(x, w_fe_p, w_head_t_p, b_head_p)
    except Exception:
        # Fallback for Pallas versions that reject 1-deep pipeline_mode.
        out_padded = _build(False)(x, w_fe_p, w_head_t_p, b_head_p)

    return out_padded[:B, :num_classes]


if __name__ == "__main__":
    # Small shapes consistent with the forward pass.
    B, C, H, W = 2, 4, 16, 16
    D, NUM_CLASSES = 32, 8

    key = jax.random.PRNGKey(0)
    k_x, k_wfe, k_wh, k_bh = jax.random.split(key, 4)

    x = jax.random.normal(k_x, (B, C, H, W), dtype=jnp.float32)
    w_fe = jax.random.normal(k_wfe, (C, D), dtype=jnp.float32)

    # --- 1) Module semantics at init: zero head weight/bias -> logits == 0.
    w_head0 = jnp.zeros((NUM_CLASSES, D), dtype=jnp.float32)
    b_head0 = jnp.zeros((NUM_CLASSES,), dtype=jnp.float32)
    p0 = prepare_dp_fsl_params(w_fe, w_head0, b_head0)
    out0 = dp_fsl_linear_forward(x, *p0, NUM_CLASSES)   # default t_hw (single HW step)
    out0 = jax.block_until_ready(out0)
    assert out0.shape == (B, NUM_CLASSES), out0.shape
    assert bool(jnp.all(out0 == 0.0)), "zero-init head must give all-zero logits"

    # --- 2) Nonzero-head pure-JAX reference check (exercises GAP + both
    #        matmuls + bias + padding), forcing a multi-step HW grid so the
    #        cross-tile accumulator path is validated too.
    w_head = jax.random.normal(k_wh, (NUM_CLASSES, D), dtype=jnp.float32)
    b_head = jax.random.normal(k_bh, (NUM_CLASSES,), dtype=jnp.float32)
    p1 = prepare_dp_fsl_params(w_fe, w_head, b_head)
    out1 = dp_fsl_linear_forward(x, *p1, NUM_CLASSES, t_hw=128)
    out1 = jax.block_until_ready(out1)

    feat_in_ref = jnp.mean(x.reshape(B, C, H * W), axis=-1)
    feat_ref = feat_in_ref @ w_fe
    ref = feat_ref @ w_head.T + b_head
    assert out1.shape == ref.shape, (out1.shape, ref.shape)
    # bf16 matmul operands in the kernel -> modest tolerance vs f32 reference.
    assert bool(jnp.allclose(out1, ref, rtol=5e-2, atol=2e-2)), (
        float(jnp.max(jnp.abs(out1 - ref))))

    print("KERNEL_OK")
</pallas_src>

<mosaic_0001>
module attributes {stable_mosaic.version = 11 : i64} {
  func.func @_dp_fsl_kernel(%arg0: i32, %arg1: i32, %arg2: memref<8x4x256xf32, #tpu.memory_space<vmem>>, %arg3: memref<4x128xbf16, #tpu.memory_space<vmem>>, %arg4: memref<128x128xbf16, #tpu.memory_space<vmem>>, %arg5: memref<1x128xf32, #tpu.memory_space<vmem>>, %arg6: memref<8x128xf32, #tpu.memory_space<vmem>>, %arg7: memref<8x4x128xf32, #tpu.memory_space<vmem>>) attributes {dimension_semantics = [#tpu.dimension_semantics<parallel>, #tpu.dimension_semantics<arbitrary>], iteration_bounds = array<i64: 1, 1>, scalar_prefetch = 0 : i64, scratch_operands = 1 : i64, tpu.core_type = #tpu.core_type<tc>, window_params = [{transform_indices = @transform_0, window_bounds = array<i64: 8, 4, 256>}, {pipeline_mode = #tpu.pipeline_mode<synchronous>, transform_indices = @transform_1, window_bounds = array<i64: 4, 128>}, {pipeline_mode = #tpu.pipeline_mode<synchronous>, transform_indices = @transform_2, window_bounds = array<i64: 128, 128>}, {pipeline_mode = #tpu.pipeline_mode<synchronous>, transform_indices = @transform_3, window_bounds = array<i64: 1, 128>}, {transform_indices = @transform_4, window_bounds = array<i64: 8, 128>}]} {
    %c0_i32 = arith.constant 0 : i32
    %0 = arith.cmpi eq, %arg1, %c0_i32 : i32
    %1 = arith.extui %0 : i1 to i32
    %c0_i32_0 = arith.constant 0 : i32
    %2 = arith.cmpi ne, %1, %c0_i32_0 : i32
    scf.if %2 {
      %cst = arith.constant 0.000000e+00 : f32
      %12 = vector.broadcast %cst : f32 to vector<8x4x128xf32>
      %c0_13 = arith.constant 0 : index
      %c0_14 = arith.constant 0 : index
      %c0_15 = arith.constant 0 : index
      %13 = vector.load %arg7[%c0_13, %c0_14, %c0_15] : memref<8x4x128xf32, #tpu.memory_space<vmem>>, vector<8x4x128xf32>
      tpu.vector_store %arg7[%c0_13, %c0_14, %c0_15], %12 {strides = array<i32>} : memref<8x4x128xf32, #tpu.memory_space<vmem>>, vector<8x4x128xf32>,
    } else {
    }
    %c0 = arith.constant 0 : index
    %c0_1 = arith.constant 0 : index
    %c0_2 = arith.constant 0 : index
    %3 = vector.load %arg2[%c0, %c0_1, %c0_2] : memref<8x4x256xf32, #tpu.memory_space<vmem>>, vector<8x4x128xf32>
    %c0_3 = arith.constant 0 : index
    %c0_4 = arith.constant 0 : index
    %c128 = arith.constant 128 : index
    %4 = vector.load %arg2[%c0_3, %c0_4, %c128] : memref<8x4x256xf32, #tpu.memory_space<vmem>>, vector<8x4x128xf32>
    %5 = arith.addf %3, %4 : vector<8x4x128xf32>
    %c0_5 = arith.constant 0 : index
    %c0_6 = arith.constant 0 : index
    %c0_7 = arith.constant 0 : index
    %6 = vector.load %arg7[%c0_5, %c0_6, %c0_7] : memref<8x4x128xf32, #tpu.memory_space<vmem>>, vector<8x4x128xf32>
    %7 = arith.addf %6, %5 : vector<8x4x128xf32>
    %c0_8 = arith.constant 0 : index
    %c0_9 = arith.constant 0 : index
    %c0_10 = arith.constant 0 : index
    %8 = vector.load %arg7[%c0_8, %c0_9, %c0_10] : memref<8x4x128xf32, #tpu.memory_space<vmem>>, vector<8x4x128xf32>
    tpu.vector_store %arg7[%c0_8, %c0_9, %c0_10], %7 {strides = array<i32>} : memref<8x4x128xf32, #tpu.memory_space<vmem>>, vector<8x4x128xf32>,
    %c0_i32_11 = arith.constant 0 : i32
    %9 = arith.cmpi eq, %arg1, %c0_i32_11 : i32
    %10 = arith.extui %9 : i1 to i32
    %c0_i32_12 = arith.constant 0 : i32
    %11 = arith.cmpi ne, %10, %c0_i32_12 : i32
    scf.if %11 {
      %c0_13 = arith.constant 0 : index
      %c0_14 = arith.constant 0 : index
      %c0_15 = arith.constant 0 : index
      %12 = vector.load %arg7[%c0_13, %c0_14, %c0_15] : memref<8x4x128xf32, #tpu.memory_space<vmem>>, vector<8x4x128xf32>
      %cst = arith.constant dense<0.000000e+00> : vector<8x4xf32>
      %13 = vector.multi_reduction <add>, %12, %cst [2] : vector<8x4x128xf32> to vector<8x4xf32>
      %cst_16 = arith.constant 3.906250e-03 : f32
      %14 = vector.broadcast %cst_16 : f32 to vector<8x4xf32>
      %15 = arith.mulf %13, %14 : vector<8x4xf32>
      %16 = arith.truncf %15 : vector<8x4xf32> to vector<8x4xbf16>
      %c0_17 = arith.constant 0 : index
      %c0_18 = arith.constant 0 : index
      %17 = vector.load %arg3[%c0_17, %c0_18] : memref<4x128xbf16, #tpu.memory_space<vmem>>, vector<4x128xbf16>
      %cst_19 = arith.constant dense<0.000000e+00> : vector<8x128xf32>
      %18 = tpu.matmul %16, %17, %cst_19 {dimension_numbers = #tpu.dot_dimension_numbers<[1], [0], [0], [1], [0, 0, 1, 1], [], []>} : vector<8x4xbf16>, vector<4x128xbf16>, vector<8x128xf32> -> vector<8x128xf32>
      %19 = arith.truncf %18 : vector<8x128xf32> to vector<8x128xbf16>
      %c0_20 = arith.constant 0 : index
      %c0_21 = arith.constant 0 : index
      %20 = vector.load %arg4[%c0_20, %c0_21] : memref<128x128xbf16, #tpu.memory_space<vmem>>, vector<128x128xbf16>
      %cst_22 = arith.constant dense<0.000000e+00> : vector<8x128xf32>
      %21 = tpu.matmul %19, %20, %cst_22 {dimension_numbers = #tpu.dot_dimension_numbers<[1], [0], [0], [1], [0, 0, 1, 1], [], []>} : vector<8x128xbf16>, vector<128x128xbf16>, vector<8x128xf32> -> vector<8x128xf32>
      %c0_23 = arith.constant 0 : index
      %c0_24 = arith.constant 0 : index
      %22 = vector.load %arg5[%c0_23, %c0_24] : memref<1x128xf32, #tpu.memory_space<vmem>>, vector<1x128xf32>
      %23 = vector.broadcast %22 : vector<1x128xf32> to vector<8x128xf32>
      %24 = arith.addf %21, %23 : vector<8x128xf32>
      %c0_25 = arith.constant 0 : index
      %c0_26 = arith.constant 0 : index
      %25 = vector.load %arg6[%c0_25, %c0_26] : memref<8x128xf32, #tpu.memory_space<vmem>>, vector<8x128xf32>
      tpu.vector_store %arg6[%c0_25, %c0_26], %24 {strides = array<i32>} : memref<8x128xf32, #tpu.memory_space<vmem>>, vector<8x128xf32>,
    } else {
    }
    return
  }
  func.func @transform_0(%arg0: i32, %arg1: i32) -> (i32, i32, i32) {
    %c0_i32 = arith.constant 0 : i32
    %c0_i32_0 = arith.constant 0 : i32
    return %arg0, %c0_i32, %arg1 : i32, i32, i32
  }
  func.func @transform_1(%arg0: i32, %arg1: i32) -> (i32, i32) {
    %c0_i32 = arith.constant 0 : i32
    %c0_i32_0 = arith.constant 0 : i32
    %c0_i32_1 = arith.constant 0 : i32
    return %c0_i32, %c0_i32_0 : i32, i32
  }
  func.func @transform_2(%arg0: i32, %arg1: i32) -> (i32, i32) {
    %c0_i32 = arith.constant 0 : i32
    %c0_i32_0 = arith.constant 0 : i32
    %c0_i32_1 = arith.constant 0 : i32
    return %c0_i32, %c0_i32_0 : i32, i32
  }
  func.func @transform_3(%arg0: i32, %arg1: i32) -> (i32, i32) {
    %c0_i32 = arith.constant 0 : i32
    %c0_i32_0 = arith.constant 0 : i32
    %c0_i32_1 = arith.constant 0 : i32
    return %c0_i32, %c0_i32_0 : i32, i32
  }
  func.func @transform_4(%arg0: i32, %arg1: i32) -> (i32, i32) {
    %c0_i32 = arith.constant 0 : i32
    %c0_i32_0 = arith.constant 0 : i32
    return %arg0, %c0_i32 : i32, i32
  }
}

module attributes {stable_mosaic.version = 11 : i64} {
  func.func @_dp_fsl_kernel(%arg0: i32, %arg1: i32, %arg2: memref<8x4x256xf32, #tpu.memory_space<vmem>>, %arg3: memref<4x128xbf16, #tpu.memory_space<vmem>>, %arg4: memref<128x128xbf16, #tpu.memory_space<vmem>>, %arg5: memref<1x128xf32, #tpu.memory_space<vmem>>, %arg6: memref<8x128xf32, #tpu.memory_space<vmem>>, %arg7: memref<8x4x128xf32, #tpu.memory_space<vmem>>) attributes {dimension_semantics = [#tpu.dimension_semantics<parallel>, #tpu.dimension_semantics<arbitrary>], iteration_bounds = array<i64: 1, 1>, scalar_prefetch = 0 : i64, scratch_operands = 1 : i64, tpu.core_type = #tpu.core_type<tc>, window_params = [{transform_indices = @transform_0, window_bounds = array<i64: 8, 4, 256>}, {pipeline_mode = #tpu.pipeline_mode<synchronous>, transform_indices = @transform_1, window_bounds = array<i64: 4, 128>}, {pipeline_mode = #tpu.pipeline_mode<synchronous>, transform_indices = @transform_2, window_bounds = array<i64: 128, 128>}, {pipeline_mode = #tpu.pipeline_mode<synchronous>, transform_indices = @transform_3, window_bounds = array<i64: 1, 128>}, {transform_indices = @transform_4, window_bounds = array<i64: 8, 128>}]} {
    %c0_i32 = arith.constant 0 : i32
    %0 = arith.cmpi eq, %arg1, %c0_i32 : i32
    %1 = arith.extui %0 : i1 to i32
    %c0_i32_0 = arith.constant 0 : i32
    %2 = arith.cmpi ne, %1, %c0_i32_0 : i32
    scf.if %2 {
      %cst = arith.constant 0.000000e+00 : f32
      %12 = vector.broadcast %cst : f32 to vector<8x4x128xf32>
      %c0_13 = arith.constant 0 : index
      %c0_14 = arith.constant 0 : index
      %c0_15 = arith.constant 0 : index
      %13 = vector.load %arg7[%c0_13, %c0_14, %c0_15] : memref<8x4x128xf32, #tpu.memory_space<vmem>>, vector<8x4x128xf32>
      tpu.vector_store %arg7[%c0_13, %c0_14, %c0_15], %12 {strides = array<i32>} : memref<8x4x128xf32, #tpu.memory_space<vmem>>, vector<8x4x128xf32>,
    } else {
    }
    %c0 = arith.constant 0 : index
    %c0_1 = arith.constant 0 : index
    %c0_2 = arith.constant 0 : index
    %3 = vector.load %arg2[%c0, %c0_1, %c0_2] : memref<8x4x256xf32, #tpu.memory_space<vmem>>, vector<8x4x128xf32>
    %c0_3 = arith.constant 0 : index
    %c0_4 = arith.constant 0 : index
    %c128 = arith.constant 128 : index
    %4 = vector.load %arg2[%c0_3, %c0_4, %c128] : memref<8x4x256xf32, #tpu.memory_space<vmem>>, vector<8x4x128xf32>
    %5 = arith.addf %3, %4 : vector<8x4x128xf32>
    %c0_5 = arith.constant 0 : index
    %c0_6 = arith.constant 0 : index
    %c0_7 = arith.constant 0 : index
    %6 = vector.load %arg7[%c0_5, %c0_6, %c0_7] : memref<8x4x128xf32, #tpu.memory_space<vmem>>, vector<8x4x128xf32>
    %7 = arith.addf %6, %5 : vector<8x4x128xf32>
    %c0_8 = arith.constant 0 : index
    %c0_9 = arith.constant 0 : index
    %c0_10 = arith.constant 0 : index
    %8 = vector.load %arg7[%c0_8, %c0_9, %c0_10] : memref<8x4x128xf32, #tpu.memory_space<vmem>>, vector<8x4x128xf32>
    tpu.vector_store %arg7[%c0_8, %c0_9, %c0_10], %7 {strides = array<i32>} : memref<8x4x128xf32, #tpu.memory_space<vmem>>, vector<8x4x128xf32>,
    %c0_i32_11 = arith.constant 0 : i32
    %9 = arith.cmpi eq, %arg1, %c0_i32_11 : i32
    %10 = arith.extui %9 : i1 to i32
    %c0_i32_12 = arith.constant 0 : i32
    %11 = arith.cmpi ne, %10, %c0_i32_12 : i32
    scf.if %11 {
      %c0_13 = arith.constant 0 : index
      %c0_14 = arith.constant 0 : index
      %c0_15 = arith.constant 0 : index
      %12 = vector.load %arg7[%c0_13, %c0_14, %c0_15] : memref<8x4x128xf32, #tpu.memory_space<vmem>>, vector<8x4x128xf32>
      %cst = arith.constant dense<0.000000e+00> : vector<8x4xf32>
      %13 = vector.multi_reduction <add>, %12, %cst [2] : vector<8x4x128xf32> to vector<8x4xf32>
      %cst_16 = arith.constant 3.906250e-03 : f32
      %14 = vector.broadcast %cst_16 : f32 to vector<8x4xf32>
      %15 = arith.mulf %13, %14 : vector<8x4xf32>
      %16 = arith.truncf %15 : vector<8x4xf32> to vector<8x4xbf16>
      %c0_17 = arith.constant 0 : index
      %c0_18 = arith.constant 0 : index
      %17 = vector.load %arg3[%c0_17, %c0_18] : memref<4x128xbf16, #tpu.memory_space<vmem>>, vector<4x128xbf16>
      %cst_19 = arith.constant dense<0.000000e+00> : vector<8x128xf32>
      %18 = tpu.matmul %16, %17, %cst_19 {dimension_numbers = #tpu.dot_dimension_numbers<[1], [0], [0], [1], [0, 0, 1, 1], [], []>} : vector<8x4xbf16>, vector<4x128xbf16>, vector<8x128xf32> -> vector<8x128xf32>
      %19 = arith.truncf %18 : vector<8x128xf32> to vector<8x128xbf16>
      %c0_20 = arith.constant 0 : index
      %c0_21 = arith.constant 0 : index
      %20 = vector.load %arg4[%c0_20, %c0_21] : memref<128x128xbf16, #tpu.memory_space<vmem>>, vector<128x128xbf16>
      %cst_22 = arith.constant dense<0.000000e+00> : vector<8x128xf32>
      %21 = tpu.matmul %19, %20, %cst_22 {dimension_numbers = #tpu.dot_dimension_numbers<[1], [0], [0], [1], [0, 0, 1, 1], [], []>} : vector<8x128xbf16>, vector<128x128xbf16>, vector<8x128xf32> -> vector<8x128xf32>
      %c0_23 = arith.constant 0 : index
      %c0_24 = arith.constant 0 : index
      %22 = vector.load %arg5[%c0_23, %c0_24] : memref<1x128xf32, #tpu.memory_space<vmem>>, vector<1x128xf32>
      %23 = vector.broadcast %22 : vector<1x128xf32> to vector<8x128xf32>
      %24 = arith.addf %21, %23 : vector<8x128xf32>
      %c0_25 = arith.constant 0 : index
      %c0_26 = arith.constant 0 : index
      %25 = vector.load %arg6[%c0_25, %c0_26] : memref<8x128xf32, #tpu.memory_space<vmem>>, vector<8x128xf32>
      tpu.vector_store %arg6[%c0_25, %c0_26], %24 {strides = array<i32>} : memref<8x128xf32, #tpu.memory_space<vmem>>, vector<8x128xf32>,
    } else {
    }
    return
  }
  func.func @transform_0(%arg0: i32, %arg1: i32) -> (i32, i32, i32) {
    %c0_i32 = arith.constant 0 : i32
    %c0_i32_0 = arith.constant 0 : i32
    return %arg0, %c0_i32, %arg1 : i32, i32, i32
  }
  func.func @transform_1(%arg0: i32, %arg1: i32) -> (i32, i32) {
    %c0_i32 = arith.constant 0 : i32
    %c0_i32_0 = arith.constant 0 : i32
    %c0_i32_1 = arith.constant 0 : i32
    return %c0_i32, %c0_i32_0 : i32, i32
  }
  func.func @transform_2(%arg0: i32, %arg1: i32) -> (i32, i32) {
    %c0_i32 = arith.constant 0 : i32
    %c0_i32_0 = arith.constant 0 : i32
    %c0_i32_1 = arith.constant 0 : i32
    return %c0_i32, %c0_i32_0 : i32, i32
  }
  func.func @transform_3(%arg0: i32, %arg1: i32) -> (i32, i32) {
    %c0_i32 = arith.constant 0 : i32
    %c0_i32_0 = arith.constant 0 : i32
    %c0_i32_1 = arith.constant 0 : i32
    return %c0_i32, %c0_i32_0 : i32, i32
  }
  func.func @transform_4(%arg0: i32, %arg1: i32) -> (i32, i32) {
    %c0_i32 = arith.constant 0 : i32
    %c0_i32_0 = arith.constant 0 : i32
    return %arg0, %c0_i32 : i32, i32
  }
}

</mosaic_0001>

<llo_original>
// kernel: tpu_custom_call.1
$region0: #{tpu_custom_call.1}
  #allocation0 [shape = 'u32[]', space=smem, size = 0x4, offset = 0x4, fixed_abs, tag = 'smem constant byte address 0x4 - core index']
  #allocation1 [shape = 'u32[144,128]{1,0:T(1,128)}', space=vmem, size = 0x12000, scoped, tag = 'internal scratch']
  #allocation2 [shape = 'f32[8,4,128]{2,1,0:T(4,128)}', space=vmem, size = 0x4000, scoped, tag = 'scratch operand']
  %s0 = inlined_call_operand.hbm [shape: f32[8,4,256], index: 0, kind: input, shape index: {}]
  %s1 = inlined_call_operand.vmem [shape: bf16[4,128], index: 1, kind: input, shape index: {}]
  %s2 = inlined_call_operand.hbm [shape: bf16[128,128], index: 2, kind: input, shape index: {}]
  %s3 = inlined_call_operand.vmem [shape: f32[1,128], index: 3, kind: input, shape index: {}]
  %s4 = inlined_call_operand.hbm [shape: f32[8,128], index: 4, kind: output, shape index: {}]
  %s5 = sld [smem:[#allocation0]]
  $region42: #{tpu_custom_call.1} parent=0
    _
  %s7 = ssub.s32 1, %s5
  %s8 = scalar_select 0, %s7, %s5
  $region1: #{tpu_custom_call.1} parent=0
    #allocation3 [shape = 'u8[32768]{0}', space=vmem, size = 0x8000, scoped, tag = 'input window, operand 0, single buffered']
    #allocation4 [shape = 's32[1]{0}', space=sflag, size = 0x4, scoped, tag = 'scoped memory for tpu_custom_call.1']
    #allocation5 [shape = 's32[1]{0}', space=sflag, size = 0x4, scoped, tag = 'scoped memory for tpu_custom_call.1']
    #allocation6 [shape = 'u8[32768]{0}', space=vmem, size = 0x8000, scoped, tag = 'input window, operand 2, single buffered']
    #allocation7 [shape = 's32[1]{0}', space=sflag, size = 0x4, scoped, tag = 'scoped memory for tpu_custom_call.1']
    #allocation8 [shape = 'u8[4096]{0}', space=vmem, size = 0x1000, scoped, tag = 'output window, operand 0, single buffered']
    %9 = vsyncpa [#allocation4], 0
    %10 = vsyncpa [#allocation7], 0
    %11 = vsyncpa [#allocation5], 0
    // Predicated region
    $region2: #{tpu_custom_call.1} parent=1 // pred_check
      _
    $region3: #{tpu_custom_call.1} parent=1 // pred_check_branch
      %13 = sbr.rel (0) target = $region5
    $region4: #{tpu_custom_call.1} parent=1 // pred_region
      %s15 = ssub.s32 1024, 1024
      %16 = vsyncadd [#allocation4], %s15
      %s17 = sshll.u32 [#allocation3], 4
      %s18 = int_to_ptr.vmem [resolvable:$true] %s17
      %23 = dma.hbm_to_vmem [thread:$0]  %s0, 1024, %s18, [#allocation4], 128, 128, 8
    $region5: #{tpu_custom_call.1} parent=1 // pred_fallthru
      _
    // Predicated region
    $region6: #{tpu_custom_call.1} parent=1 // pred_check
      _
    $region7: #{tpu_custom_call.1} parent=1 // pred_check_branch
      %25 = sbr.rel (0) target = $region9
    $region8: #{tpu_custom_call.1} parent=1 // pred_region
      _
    $region9: #{tpu_custom_call.1} parent=1 // pred_fallthru
      _
    // Predicated region
    $region10: #{tpu_custom_call.1} parent=1 // pred_check
      _
    $region11: #{tpu_custom_call.1} parent=1 // pred_check_branch
      %27 = sbr.rel (0) target = $region13
    $region12: #{tpu_custom_call.1} parent=1 // pred_region
      %s29 = ssub.s32 1024, 1024
      %30 = vsyncadd [#allocation7], %s29
      %s31 = sshll.u32 [#allocation6], 4
      %s32 = int_to_ptr.vmem [resolvable:$true] %s31
      %37 = dma.hbm_to_vmem [thread:$0]  %s2, 1024, %s32, [#allocation7], 64, 64, 4
    $region13: #{tpu_custom_call.1} parent=1 // pred_fallthru
      _
    // Predicated region
    $region14: #{tpu_custom_call.1} parent=1 // pred_check
      _
    $region15: #{tpu_custom_call.1} parent=1 // pred_check_branch
      %39 = sbr.rel (0) target = $region17
    $region16: #{tpu_custom_call.1} parent=1 // pred_region
      _
    $region17: #{tpu_custom_call.1} parent=1 // pred_fallthru
      _
    // Predicated region
    $region18: #{tpu_custom_call.1} parent=1 // pred_check
      _
    $region19: #{tpu_custom_call.1} parent=1 // pred_check_branch
      %41 = sbr.rel (0) target = $region21
    $region20: #{tpu_custom_call.1} parent=1 // pred_region
      %42 = dma.done [#allocation4], 1024
    $region21: #{tpu_custom_call.1} parent=1 // pred_fallthru
      _
    // Predicated region
    $region22: #{tpu_custom_call.1} parent=1 // pred_check
      _
    $region23: #{tpu_custom_call.1} parent=1 // pred_check_branch
      %44 = sbr.rel (0) target = $region25
    $region24: #{tpu_custom_call.1} parent=1 // pred_region
      %45 = dma.done [#allocation7], 1024
    $region25: #{tpu_custom_call.1} parent=1 // pred_fallthru
      _
    %p47 = scmp.eq.s32.totalorder 0, 0
    // Predicated region
    $region26: #{tpu_custom_call.1} parent=1 // pred_check
      %p48 = pneg %p47
    $region27: #{tpu_custom_call.1} parent=1 // pred_check_branch
      %50 = sbr.rel (%p48) target = $region29
    $region28: #{tpu_custom_call.1} parent=1 // pred_region
      %51 = vst [vmem:[#allocation2] sm:$0xf] 0.0
      %52 = vst [vmem:[#allocation2 + $0x4] sm:$0xf] 0.0
      %53 = vst [vmem:[#allocation2 + $0x8] sm:$0xf] 0.0
      %54 = vst [vmem:[#allocation2 + $0xc] sm:$0xf] 0.0
      %55 = vst [vmem:[#allocation2 + $0x10] sm:$0xf] 0.0
      %56 = vst [vmem:[#allocation2 + $0x14] sm:$0xf] 0.0
      %57 = vst [vmem:[#allocation2 + $0x18] sm:$0xf] 0.0
      %58 = vst [vmem:[#allocation2 + $0x1c] sm:$0xf] 0.0
    $region29: #{tpu_custom_call.1} parent=1 // pred_fallthru
      _
    %v59 = vld [vmem:[#allocation3] sm:$0xf]
    %v60 = vld [vmem:[#allocation3 + $0x8] sm:$0xf]
    %v61 = vld [vmem:[#allocation3 + $0x10] sm:$0xf]
    %v62 = vld [vmem:[#allocation3 + $0x18] sm:$0xf]
    %v63 = vld [vmem:[#allocation3 + $0x20] sm:$0xf]
    %v64 = vld [vmem:[#allocation3 + $0x28] sm:$0xf]
    %v65 = vld [vmem:[#allocation3 + $0x30] sm:$0xf]
    %v66 = vld [vmem:[#allocation3 + $0x38] sm:$0xf]
    %v67 = vld [vmem:[#allocation3 + $0x4] sm:$0xf]
    %v68 = vld [vmem:[#allocation3 + $0xc] sm:$0xf]
    %v69 = vld [vmem:[#allocation3 + $0x14] sm:$0xf]
    %v70 = vld [vmem:[#allocation3 + $0x1c] sm:$0xf]
    %v71 = vld [vmem:[#allocation3 + $0x24] sm:$0xf]
    %v72 = vld [vmem:[#allocation3 + $0x2c] sm:$0xf]
    %v73 = vld [vmem:[#allocation3 + $0x34] sm:$0xf]
    %v74 = vld [vmem:[#allocation3 + $0x3c] sm:$0xf]
    %v75 = vadd.f32 %v59, %v67
    %v76 = vadd.f32 %v60, %v68
    %v77 = vadd.f32 %v61, %v69
    %v78 = vadd.f32 %v62, %v70
    %v79 = vadd.f32 %v63, %v71
    %v80 = vadd.f32 %v64, %v72
    %v81 = vadd.f32 %v65, %v73
    %v82 = vadd.f32 %v66, %v74
    %v83 = vld [vmem:[#allocation2] sm:$0xf]
    %v84 = vld [vmem:[#allocation2 + $0x4] sm:$0xf]
    %v85 = vld [vmem:[#allocation2 + $0x8] sm:$0xf]
    %v86 = vld [vmem:[#allocation2 + $0xc] sm:$0xf]
    %v87 = vld [vmem:[#allocation2 + $0x10] sm:$0xf]
    %v88 = vld [vmem:[#allocation2 + $0x14] sm:$0xf]
    %v89 = vld [vmem:[#allocation2 + $0x18] sm:$0xf]
    %v90 = vld [vmem:[#allocation2 + $0x1c] sm:$0xf]
    %v91 = vadd.f32 %v83, %v75
    %v92 = vadd.f32 %v84, %v76
    %v93 = vadd.f32 %v85, %v77
    %v94 = vadd.f32 %v86, %v78
    %v95 = vadd.f32 %v87, %v79
    %v96 = vadd.f32 %v88, %v80
    %v97 = vadd.f32 %v89, %v81
    %v98 = vadd.f32 %v90, %v82
    %99 = vst [vmem:[#allocation2] sm:$0xf] %v91
    %100 = vst [vmem:[#allocation2 + $0x4] sm:$0xf] %v92
    %101 = vst [vmem:[#allocation2 + $0x8] sm:$0xf] %v93
    %102 = vst [vmem:[#allocation2 + $0xc] sm:$0xf] %v94
    %103 = vst [vmem:[#allocation2 + $0x10] sm:$0xf] %v95
    %104 = vst [vmem:[#allocation2 + $0x14] sm:$0xf] %v96
    %105 = vst [vmem:[#allocation2 + $0x18] sm:$0xf] %v97
    %106 = vst [vmem:[#allocation2 + $0x1c] sm:$0xf] %v98
    // Predicated region
    $region30: #{tpu_custom_call.1} parent=1 // pred_check
      %p107 = pneg %p47
    $region31: #{tpu_custom_call.1} parent=1 // pred_check_branch
      %109 = sbr.rel (%p107) target = $region33
    $region32: #{tpu_custom_call.1} parent=1 // pred_region
      %v110 = vld [vmem:[#allocation2] sm:$0xf]
      %v111 = vld [vmem:[#allocation2 + $0x4] sm:$0xf]
      %v112 = vld [vmem:[#allocation2 + $0x8] sm:$0xf]
      %v113 = vld [vmem:[#allocation2 + $0xc] sm:$0xf]
      %v114 = vld [vmem:[#allocation2 + $0x10] sm:$0xf]
      %v115 = vld [vmem:[#allocation2 + $0x14] sm:$0xf]
      %v116 = vld [vmem:[#allocation2 + $0x18] sm:$0xf]
      %v117 = vld [vmem:[#allocation2 + $0x1c] sm:$0xf]
      %vm118 = vcmask 1043456
      %v119 = vsel %vm118, %v110, 0.0
      %120 = vadd.xlane.f32.xlu0 %v119
      %v121 = vpop.xlane.xlu0 %120
      %v122 = vsel %vm118, %v111, 0.0
      %123 = vadd.xlane.f32.xlu0 %v122
      %v124 = vpop.xlane.xlu0 %123
      %v125 = vsel %vm118, %v112, 0.0
      %126 = vadd.xlane.f32.xlu0 %v125
      %v127 = vpop.xlane.xlu0 %126
      %v128 = vsel %vm118, %v113, 0.0
      %129 = vadd.xlane.f32.xlu0 %v128
      %v130 = vpop.xlane.xlu0 %129
      %v131 = vsel %vm118, %v114, 0.0
      %132 = vadd.xlane.f32.xlu0 %v131
      %v133 = vpop.xlane.xlu0 %132
      %v134 = vsel %vm118, %v115, 0.0
      %135 = vadd.xlane.f32.xlu0 %v134
      %v136 = vpop.xlane.xlu0 %135
      %v137 = vsel %vm118, %v116, 0.0
      %138 = vadd.xlane.f32.xlu0 %v137
      %v139 = vpop.xlane.xlu0 %138
      %v140 = vsel %vm118, %v117, 0.0
      %141 = vadd.xlane.f32.xlu0 %v140
      %v142 = vpop.xlane.xlu0 %141
      %v143 = vmul.f32 %v121, 0.00390625
      %v144 = vmul.f32 %v124, 0.00390625
      %v145 = vmul.f32 %v127, 0.00390625
      %v146 = vmul.f32 %v130, 0.00390625
      %v147 = vmul.f32 %v133, 0.00390625
      %v148 = vmul.f32 %v136, 0.00390625
      %v149 = vmul.f32 %v139, 0.00390625
      %v150 = vmul.f32 %v142, 0.00390625
      %v151 = vpack.c.bf16 %v143, %v143
      %v152 = vpack.c.bf16 %v144, %v144
      %v153 = vpack.c.bf16 %v145, %v145
      %v154 = vpack.c.bf16 %v146, %v146
      %v155 = vpack.c.bf16 %v147, %v147
      %v156 = vpack.c.bf16 %v148, %v148
      %v157 = vpack.c.bf16 %v149, %v149
      %v158 = vpack.c.bf16 %v150, %v150
      %v159 = vld [vmem:[%s1] sm:$0x3]
      %v168 = vunpack.c.l.b16 %v151
      %v169 = vunpack.c.l.b16 %v152
      %v170 = vunpack.c.l.b16 %v153
      %v171 = vunpack.c.l.b16 %v154
      %v172 = vunpack.c.l.b16 %v155
      %v173 = vunpack.c.l.b16 %v156
      %v174 = vunpack.c.l.b16 %v157
      %v175 = vunpack.c.l.b16 %v158
      %v176 = vlaneseq
      %v177 = vand.u32 %v176, 127
      %v178 = vlaneseq
      %v179 = vshrl.u32 %v178, 7
      %v180 = vsub.s32 %v177, %v179
      %v181 = vrot.slane %v168, %v180
      %v182 = vlaneseq
      %v183 = vshrl.u32 %v182, 7
      %v184 = vsub.s32 %v177, %v183
      %v185 = vrot.slane %v169, %v184
      %v186 = vlaneseq
      %v187 = vshrl.u32 %v186, 7
      %v188 = vsub.s32 %v177, %v187
      %v189 = vrot.slane %v170, %v188
      %v190 = vlaneseq
      %v191 = vshrl.u32 %v190, 7
      %v192 = vsub.s32 %v177, %v191
      %v193 = vrot.slane %v171, %v192
      %v194 = vlaneseq
      %v195 = vshrl.u32 %v194, 7
      %v196 = vsub.s32 %v177, %v195
      %v197 = vrot.slane %v172, %v196
      %v198 = vlaneseq
      %v199 = vshrl.u32 %v198, 7
      %v200 = vsub.s32 %v177, %v199
      %v201 = vrot.slane %v173, %v200
      %v202 = vlaneseq
      %v203 = vshrl.u32 %v202, 7
      %v204 = vsub.s32 %v177, %v203
      %v205 = vrot.slane %v174, %v204
      %v206 = vlaneseq
      %v207 = vshrl.u32 %v206, 7
      %v208 = vsub.s32 %v177, %v207
      %v209 = vrot.slane %v175, %v208
      %vm210 = vcmask 1041409
      %v211 = vsel %vm210, %v185, %v181
      %vm212 = vcmask 1042434
      %v213 = vsel %vm212, %v189, %v211
      %vm214 = vcmask 1043459
      %v215 = vsel %vm214, %v193, %v213
      %vm216 = vcmask 1044484
      %v217 = vsel %vm216, %v197, %v215
      %vm218 = vcmask 1045509
      %v219 = vsel %vm218, %v201, %v217
      %vm220 = vcmask 1046534
      %v221 = vsel %vm220, %v205, %v219
      %vm222 = vcmask 1047559
      %v223 = vsel %vm222, %v209, %v221
      %v224 = vpack.c.b16 %v223, %v223
      %vm225 = vcmask 31744
      %v227 = vsel %vm225, %v224, 0
      %vm229 = vcmask 1041408
      %v231 = vsel %vm229, %v159, 0
      %233 = vmatprep.subr.bf16.mxu0 0
      %234 = vmatpush1.bf16.msra.mxu0 %v231
      %235 = vmatprep.subr.bf16.mxu0 0
      %236 = vmatpush1.bf16.msra.mxu0 0
      %237 = vmatprep.subr.bf16.mxu0 0
      %238 = vmatpush1.bf16.msra.mxu0 0
      %239 = vmatprep.subr.bf16.mxu0 0
      %240 = vmatpush1.bf16.msra.mxu0 0
      %241 = vmatprep.subr.bf16.mxu0 0
      %242 = vmatpush1.bf16.msra.mxu0 0
      %243 = vmatprep.subr.bf16.mxu0 0
      %244 = vmatpush1.bf16.msra.mxu0 0
      %245 = vmatprep.subr.bf16.mxu0 0
      %246 = vmatpush1.bf16.msra.mxu0 0
      %247 = vmatprep.subr.bf16.mxu0 0
      %248 = vmatpush1.bf16.msra.mxu0 0
      %249 = vmatprep.subr.bf16.mxu0 0
      %250 = vmatpush1.bf16.msra.mxu0 0
      %251 = vmatprep.subr.bf16.mxu0 0
      %252 = vmatpush1.bf16.msra.mxu0 0
      %253 = vmatprep.subr.bf16.mxu0 0
      %254 = vmatpush1.bf16.msra.mxu0 0
      %255 = vmatprep.subr.bf16.mxu0 0
      %256 = vmatpush1.bf16.msra.mxu0 0
      %257 = vmatprep.subr.bf16.mxu0 0
      %258 = vmatpush1.bf16.msra.mxu0 0
      %259 = vmatprep.subr.bf16.mxu0 0
      %260 = vmatpush1.bf16.msra.mxu0 0
      %261 = vmatprep.subr.bf16.mxu0 0
      %262 = vmatpush1.bf16.msra.mxu0 0
      %263 = vmatprep.subr.bf16.mxu0 0
      %264 = vmatpush1.bf16.msra.mxu0 0
      %265 = vmatprep.mubr.bf16.mxu0 0
      %266 = vmatmul.mubr.bf16.gmra.mrb[0].mxu0 %v227
      %v267 = vpop.f32.mrb[0].mxu0
      %v268 = vadd.f32 0.0, %v267
      %v269 = vpop.f32.mrb[0].mxu0
      %v270 = vpop.f32.mrb[0].mxu0
      %v271 = vpop.f32.mrb[0].mxu0
      %272 = vdwg.mxu0
      %v273 = vpack.c.bf16 %v268, %v268
      %v274 = vld [vmem:[#allocation6] sm:$0xf]
      %v275 = vld [vmem:[#allocation6 + $0x4] sm:$0xf]
      %v276 = vld [vmem:[#allocation6 + $0x8] sm:$0xf]
      %v277 = vld [vmem:[#allocation6 + $0xc] sm:$0xf]
      %v278 = vld [vmem:[#allocation6 + $0x10] sm:$0xf]
      %v279 = vld [vmem:[#allocation6 + $0x14] sm:$0xf]
      %v280 = vld [vmem:[#allocation6 + $0x18] sm:$0xf]
      %v281 = vld [vmem:[#allocation6 + $0x1c] sm:$0xf]
      %v282 = vld [vmem:[#allocation6 + $0x20] sm:$0xf]
      %v283 = vld [vmem:[#allocation6 + $0x24] sm:$0xf]
      %v284 = vld [vmem:[#allocation6 + $0x28] sm:$0xf]
      %v285 = vld [vmem:[#allocation6 + $0x2c] sm:$0xf]
      %v286 = vld [vmem:[#allocation6 + $0x30] sm:$0xf]
      %v287 = vld [vmem:[#allocation6 + $0x34] sm:$0xf]
      %v288 = vld [vmem:[#allocation6 + $0x38] sm:$0xf]
      %v289 = vld [vmem:[#allocation6 + $0x3c] sm:$0xf]
      %v290 = vld [vmem:[%s3] sm:$0x1]
      %v292 = vlaneseq
      %v293 = vshrl.u32 %v292, 7
      %v294 = vsub.s32 0, %v293
      %v295 = vrot.slane %v290, %v294
      %v313 = vunpack.c.l.b16 %v274
      %v314 = vunpack.c.l.b16 %v275
      %v315 = vunpack.c.l.b16 %v276
      %v316 = vunpack.c.l.b16 %v277
      %v317 = vunpack.c.l.b16 %v278
      %v318 = vunpack.c.l.b16 %v279
      %v319 = vunpack.c.l.b16 %v280
      %v320 = vunpack.c.l.b16 %v281
      %v321 = vunpack.c.l.b16 %v282
      %v322 = vunpack.c.l.b16 %v283
      %v323 = vunpack.c.l.b16 %v284
      %v324 = vunpack.c.l.b16 %v285
      %v325 = vunpack.c.l.b16 %v286
      %v326 = vunpack.c.l.b16 %v287
      %v327 = vunpack.c.l.b16 %v288
      %v328 = vunpack.c.l.b16 %v289
      %v329 = vpack.c.b16 %v314, %v313
      %v330 = vpack.c.b16 %v316, %v315
      %v331 = vpack.c.b16 %v318, %v317
      %v332 = vpack.c.b16 %v320, %v319
      %v333 = vpack.c.b16 %v322, %v321
      %v334 = vpack.c.b16 %v324, %v323
      %v335 = vpack.c.b16 %v326, %v325
      %v336 = vpack.c.b16 %v328, %v327
      %345 = vmatprep.subr.bf16.mxu0 0
      %346 = vmatpush1.bf16.msra.mxu0 %v329
      %347 = vmatprep.subr.bf16.mxu0 0
      %348 = vmatpush1.bf16.msra.mxu0 %v330
      %349 = vmatprep.subr.bf16.mxu0 0
      %350 = vmatpush1.bf16.msra.mxu0 %v331
      %351 = vmatprep.subr.bf16.mxu0 0
      %352 = vmatpush1.bf16.msra.mxu0 %v332
      %353 = vmatprep.subr.bf16.mxu0 0
      %354 = vmatpush1.bf16.msra.mxu0 %v333
      %355 = vmatprep.subr.bf16.mxu0 0
      %356 = vmatpush1.bf16.msra.mxu0 %v334
      %357 = vmatprep.subr.bf16.mxu0 0
      %358 = vmatpush1.bf16.msra.mxu0 %v335
      %359 = vmatprep.subr.bf16.mxu0 0
      %360 = vmatpush1.bf16.msra.mxu0 %v336
      %361 = vmatprep.subr.bf16.mxu0 0
      %362 = vmatpush1.bf16.msra.mxu0 0
      %363 = vmatprep.subr.bf16.mxu0 0
      %364 = vmatpush1.bf16.msra.mxu0 0
      %365 = vmatprep.subr.bf16.mxu0 0
      %366 = vmatpush1.bf16.msra.mxu0 0
      %367 = vmatprep.subr.bf16.mxu0 0
      %368 = vmatpush1.bf16.msra.mxu0 0
      %369 = vmatprep.subr.bf16.mxu0 0
      %370 = vmatpush1.bf16.msra.mxu0 0
      %371 = vmatprep.subr.bf16.mxu0 0
      %372 = vmatpush1.bf16.msra.mxu0 0
      %373 = vmatprep.subr.bf16.mxu0 0
      %374 = vmatpush1.bf16.msra.mxu0 0
      %375 = vmatprep.subr.bf16.mxu0 0
      %376 = vmatpush1.bf16.msra.mxu0 0
      %377 = vmatprep.mubr.bf16.mxu0 0
      %378 = vmatmul.mubr.bf16.gmra.mrb[0].mxu0 %v273
      %v379 = vpop.f32.mrb[0].mxu0
      %v380 = vadd.f32 %v295, %v379
      %v381 = vpop.f32.mrb[0].mxu0
      %v382 = vpop.f32.mrb[0].mxu0
      %v383 = vpop.f32.mrb[0].mxu0
      %384 = vdwg.mxu0
      %385 = vst [vmem:[#allocation8] sm:$0xff] %v380
    $region33: #{tpu_custom_call.1} parent=1 // pred_fallthru
      _
    // Predicated region
    $region34: #{tpu_custom_call.1} parent=1 // pred_check
      _
    $region35: #{tpu_custom_call.1} parent=1 // pred_check_branch
      %387 = sbr.rel (0) target = $region37
    $region36: #{tpu_custom_call.1} parent=1 // pred_region
      %s389 = ssub.s32 128, 128
      %390 = vsyncadd [#allocation5], %s389
      %s392 = sshll.u32 [#allocation8], 4
      %s393 = int_to_ptr.vmem [resolvable:$true] %s392
      %395 = dma.vmem_to_hbm [thread:$0]  %s393, 128, %s4, [#allocation5]
    $region37: #{tpu_custom_call.1} parent=1 // pred_fallthru
      _
    // Predicated region
    $region38: #{tpu_custom_call.1} parent=1 // pred_check
      _
    $region39: #{tpu_custom_call.1} parent=1 // pred_check_branch
      %397 = sbr.rel (0) target = $region41
    $region40: #{tpu_custom_call.1} parent=1 // pred_region
      %398 = dma.done [#allocation5], 128
    $region41: #{tpu_custom_call.1} parent=1 // pred_fallthru
      _
    %399 = vsyncpa [#allocation4], 1
    %400 = vsyncpa [#allocation7], 1
    %401 = vsyncpa [#allocation5], 1

// kernel: tpu_custom_call.1
$region0: #{tpu_custom_call.1}
  #allocation0 [shape = 'u32[]', space=smem, size = 0x4, offset = 0x4, fixed_abs, tag = 'smem constant byte address 0x4 - core index']
  #allocation1 [shape = 'u32[144,128]{1,0:T(1,128)}', space=vmem, size = 0x12000, scoped, tag = 'internal scratch']
  #allocation2 [shape = 'f32[8,4,128]{2,1,0:T(4,128)}', space=vmem, size = 0x4000, scoped, tag = 'scratch operand']
  %s0 = inlined_call_operand.hbm [shape: f32[8,4,256], index: 0, kind: input, shape index: {}]
  %s1 = inlined_call_operand.vmem [shape: bf16[4,128], index: 1, kind: input, shape index: {}]
  %s2 = inlined_call_operand.hbm [shape: bf16[128,128], index: 2, kind: input, shape index: {}]
  %s3 = inlined_call_operand.vmem [shape: f32[1,128], index: 3, kind: input, shape index: {}]
  %s4 = inlined_call_operand.hbm [shape: f32[8,128], index: 4, kind: output, shape index: {}]
  %s5 = sld [smem:[#allocation0]]
  $region42: #{tpu_custom_call.1} parent=0
    _
  %s7 = ssub.s32 1, %s5
  %s8 = scalar_select 0, %s7, %s5
  $region1: #{tpu_custom_call.1} parent=0
    #allocation3 [shape = 'u8[32768]{0}', space=vmem, size = 0x8000, scoped, tag = 'input window, operand 0, single buffered']
    #allocation4 [shape = 's32[1]{0}', space=sflag, size = 0x4, scoped, tag = 'scoped memory for tpu_custom_call.1']
    #allocation5 [shape = 's32[1]{0}', space=sflag, size = 0x4, scoped, tag = 'scoped memory for tpu_custom_call.1']
    #allocation6 [shape = 'u8[32768]{0}', space=vmem, size = 0x8000, scoped, tag = 'input window, operand 2, single buffered']
    #allocation7 [shape = 's32[1]{0}', space=sflag, size = 0x4, scoped, tag = 'scoped memory for tpu_custom_call.1']
    #allocation8 [shape = 'u8[4096]{0}', space=vmem, size = 0x1000, scoped, tag = 'output window, operand 0, single buffered']
    %9 = vsyncpa [#allocation4], 0
    %10 = vsyncpa [#allocation7], 0
    %11 = vsyncpa [#allocation5], 0
    // Predicated region
    $region2: #{tpu_custom_call.1} parent=1 // pred_check
      _
    $region3: #{tpu_custom_call.1} parent=1 // pred_check_branch
      %13 = sbr.rel (0) target = $region5
    $region4: #{tpu_custom_call.1} parent=1 // pred_region
      %s15 = ssub.s32 1024, 1024
      %16 = vsyncadd [#allocation4], %s15
      %s17 = sshll.u32 [#allocation3], 4
      %s18 = int_to_ptr.vmem [resolvable:$true] %s17
      %23 = dma.hbm_to_vmem [thread:$0]  %s0, 1024, %s18, [#allocation4], 128, 128, 8
    $region5: #{tpu_custom_call.1} parent=1 // pred_fallthru
      _
    // Predicated region
    $region6: #{tpu_custom_call.1} parent=1 // pred_check
      _
    $region7: #{tpu_custom_call.1} parent=1 // pred_check_branch
      %25 = sbr.rel (0) target = $region9
    $region8: #{tpu_custom_call.1} parent=1 // pred_region
      _
    $region9: #{tpu_custom_call.1} parent=1 // pred_fallthru
      _
    // Predicated region
    $region10: #{tpu_custom_call.1} parent=1 // pred_check
      _
    $region11: #{tpu_custom_call.1} parent=1 // pred_check_branch
      %27 = sbr.rel (0) target = $region13
    $region12: #{tpu_custom_call.1} parent=1 // pred_region
      %s29 = ssub.s32 1024, 1024
      %30 = vsyncadd [#allocation7], %s29
      %s31 = sshll.u32 [#allocation6], 4
      %s32 = int_to_ptr.vmem [resolvable:$true] %s31
      %37 = dma.hbm_to_vmem [thread:$0]  %s2, 1024, %s32, [#allocation7], 64, 64, 4
    $region13: #{tpu_custom_call.1} parent=1 // pred_fallthru
      _
    // Predicated region
    $region14: #{tpu_custom_call.1} parent=1 // pred_check
      _
    $region15: #{tpu_custom_call.1} parent=1 // pred_check_branch
      %39 = sbr.rel (0) target = $region17
    $region16: #{tpu_custom_call.1} parent=1 // pred_region
      _
    $region17: #{tpu_custom_call.1} parent=1 // pred_fallthru
      _
    // Predicated region
    $region18: #{tpu_custom_call.1} parent=1 // pred_check
      _
    $region19: #{tpu_custom_call.1} parent=1 // pred_check_branch
      %41 = sbr.rel (0) target = $region21
    $region20: #{tpu_custom_call.1} parent=1 // pred_region
      %42 = dma.done [#allocation4], 1024
    $region21: #{tpu_custom_call.1} parent=1 // pred_fallthru
      _
    // Predicated region
    $region22: #{tpu_custom_call.1} parent=1 // pred_check
      _
    $region23: #{tpu_custom_call.1} parent=1 // pred_check_branch
      %44 = sbr.rel (0) target = $region25
    $region24: #{tpu_custom_call.1} parent=1 // pred_region
      %45 = dma.done [#allocation7], 1024
    $region25: #{tpu_custom_call.1} parent=1 // pred_fallthru
      _
    %p47 = scmp.eq.s32.totalorder 0, 0
    // Predicated region
    $region26: #{tpu_custom_call.1} parent=1 // pred_check
      %p48 = pneg %p47
    $region27: #{tpu_custom_call.1} parent=1 // pred_check_branch
      %50 = sbr.rel (%p48) target = $region29
    $region28: #{tpu_custom_call.1} parent=1 // pred_region
      %51 = vst [vmem:[#allocation2] sm:$0xf] 0.0
      %52 = vst [vmem:[#allocation2 + $0x4] sm:$0xf] 0.0
      %53 = vst [vmem:[#allocation2 + $0x8] sm:$0xf] 0.0
      %54 = vst [vmem:[#allocation2 + $0xc] sm:$0xf] 0.0
      %55 = vst [vmem:[#allocation2 + $0x10] sm:$0xf] 0.0
      %56 = vst [vmem:[#allocation2 + $0x14] sm:$0xf] 0.0
      %57 = vst [vmem:[#allocation2 + $0x18] sm:$0xf] 0.0
      %58 = vst [vmem:[#allocation2 + $0x1c] sm:$0xf] 0.0
    $region29: #{tpu_custom_call.1} parent=1 // pred_fallthru
      _
    %v59 = vld [vmem:[#allocation3] sm:$0xf]
    %v60 = vld [vmem:[#allocation3 + $0x8] sm:$0xf]
    %v61 = vld [vmem:[#allocation3 + $0x10] sm:$0xf]
    %v62 = vld [vmem:[#allocation3 + $0x18] sm:$0xf]
    %v63 = vld [vmem:[#allocation3 + $0x20] sm:$0xf]
    %v64 = vld [vmem:[#allocation3 + $0x28] sm:$0xf]
    %v65 = vld [vmem:[#allocation3 + $0x30] sm:$0xf]
    %v66 = vld [vmem:[#allocation3 + $0x38] sm:$0xf]
    %v67 = vld [vmem:[#allocation3 + $0x4] sm:$0xf]
    %v68 = vld [vmem:[#allocation3 + $0xc] sm:$0xf]
    %v69 = vld [vmem:[#allocation3 + $0x14] sm:$0xf]
    %v70 = vld [vmem:[#allocation3 + $0x1c] sm:$0xf]
    %v71 = vld [vmem:[#allocation3 + $0x24] sm:$0xf]
    %v72 = vld [vmem:[#allocation3 + $0x2c] sm:$0xf]
    %v73 = vld [vmem:[#allocation3 + $0x34] sm:$0xf]
    %v74 = vld [vmem:[#allocation3 + $0x3c] sm:$0xf]
    %v75 = vadd.f32 %v59, %v67
    %v76 = vadd.f32 %v60, %v68
    %v77 = vadd.f32 %v61, %v69
    %v78 = vadd.f32 %v62, %v70
    %v79 = vadd.f32 %v63, %v71
    %v80 = vadd.f32 %v64, %v72
    %v81 = vadd.f32 %v65, %v73
    %v82 = vadd.f32 %v66, %v74
    %v83 = vld [vmem:[#allocation2] sm:$0xf]
    %v84 = vld [vmem:[#allocation2 + $0x4] sm:$0xf]
    %v85 = vld [vmem:[#allocation2 + $0x8] sm:$0xf]
    %v86 = vld [vmem:[#allocation2 + $0xc] sm:$0xf]
    %v87 = vld [vmem:[#allocation2 + $0x10] sm:$0xf]
    %v88 = vld [vmem:[#allocation2 + $0x14] sm:$0xf]
    %v89 = vld [vmem:[#allocation2 + $0x18] sm:$0xf]
    %v90 = vld [vmem:[#allocation2 + $0x1c] sm:$0xf]
    %v91 = vadd.f32 %v83, %v75
    %v92 = vadd.f32 %v84, %v76
    %v93 = vadd.f32 %v85, %v77
    %v94 = vadd.f32 %v86, %v78
    %v95 = vadd.f32 %v87, %v79
    %v96 = vadd.f32 %v88, %v80
    %v97 = vadd.f32 %v89, %v81
    %v98 = vadd.f32 %v90, %v82
    %99 = vst [vmem:[#allocation2] sm:$0xf] %v91
    %100 = vst [vmem:[#allocation2 + $0x4] sm:$0xf] %v92
    %101 = vst [vmem:[#allocation2 + $0x8] sm:$0xf] %v93
    %102 = vst [vmem:[#allocation2 + $0xc] sm:$0xf] %v94
    %103 = vst [vmem:[#allocation2 + $0x10] sm:$0xf] %v95
    %104 = vst [vmem:[#allocation2 + $0x14] sm:$0xf] %v96
    %105 = vst [vmem:[#allocation2 + $0x18] sm:$0xf] %v97
    %106 = vst [vmem:[#allocation2 + $0x1c] sm:$0xf] %v98
    // Predicated region
    $region30: #{tpu_custom_call.1} parent=1 // pred_check
      %p107 = pneg %p47
    $region31: #{tpu_custom_call.1} parent=1 // pred_check_branch
      %109 = sbr.rel (%p107) target = $region33
    $region32: #{tpu_custom_call.1} parent=1 // pred_region
      %v110 = vld [vmem:[#allocation2] sm:$0xf]
      %v111 = vld [vmem:[#allocation2 + $0x4] sm:$0xf]
      %v112 = vld [vmem:[#allocation2 + $0x8] sm:$0xf]
      %v113 = vld [vmem:[#allocation2 + $0xc] sm:$0xf]
      %v114 = vld [vmem:[#allocation2 + $0x10] sm:$0xf]
      %v115 = vld [vmem:[#allocation2 + $0x14] sm:$0xf]
      %v116 = vld [vmem:[#allocation2 + $0x18] sm:$0xf]
      %v117 = vld [vmem:[#allocation2 + $0x1c] sm:$0xf]
      %vm118 = vcmask 1043456
      %v119 = vsel %vm118, %v110, 0.0
      %120 = vadd.xlane.f32.xlu0 %v119
      %v121 = vpop.xlane.xlu0 %120
      %v122 = vsel %vm118, %v111, 0.0
      %123 = vadd.xlane.f32.xlu0 %v122
      %v124 = vpop.xlane.xlu0 %123
      %v125 = vsel %vm118, %v112, 0.0
      %126 = vadd.xlane.f32.xlu0 %v125
      %v127 = vpop.xlane.xlu0 %126
      %v128 = vsel %vm118, %v113, 0.0
      %129 = vadd.xlane.f32.xlu0 %v128
      %v130 = vpop.xlane.xlu0 %129
      %v131 = vsel %vm118, %v114, 0.0
      %132 = vadd.xlane.f32.xlu0 %v131
      %v133 = vpop.xlane.xlu0 %132
      %v134 = vsel %vm118, %v115, 0.0
      %135 = vadd.xlane.f32.xlu0 %v134
      %v136 = vpop.xlane.xlu0 %135
      %v137 = vsel %vm118, %v116, 0.0
      %138 = vadd.xlane.f32.xlu0 %v137
      %v139 = vpop.xlane.xlu0 %138
      %v140 = vsel %vm118, %v117, 0.0
      %141 = vadd.xlane.f32.xlu0 %v140
      %v142 = vpop.xlane.xlu0 %141
      %v143 = vmul.f32 %v121, 0.00390625
      %v144 = vmul.f32 %v124, 0.00390625
      %v145 = vmul.f32 %v127, 0.00390625
      %v146 = vmul.f32 %v130, 0.00390625
      %v147 = vmul.f32 %v133, 0.00390625
      %v148 = vmul.f32 %v136, 0.00390625
      %v149 = vmul.f32 %v139, 0.00390625
      %v150 = vmul.f32 %v142, 0.00390625
      %v151 = vpack.c.bf16 %v143, %v143
      %v152 = vpack.c.bf16 %v144, %v144
      %v153 = vpack.c.bf16 %v145, %v145
      %v154 = vpack.c.bf16 %v146, %v146
      %v155 = vpack.c.bf16 %v147, %v147
      %v156 = vpack.c.bf16 %v148, %v148
      %v157 = vpack.c.bf16 %v149, %v149
      %v158 = vpack.c.bf16 %v150, %v150
      %v159 = vld [vmem:[%s1] sm:$0x3]
      %v168 = vunpack.c.l.b16 %v151
      %v169 = vunpack.c.l.b16 %v152
      %v170 = vunpack.c.l.b16 %v153
      %v171 = vunpack.c.l.b16 %v154
      %v172 = vunpack.c.l.b16 %v155
      %v173 = vunpack.c.l.b16 %v156
      %v174 = vunpack.c.l.b16 %v157
      %v175 = vunpack.c.l.b16 %v158
      %v176 = vlaneseq
      %v177 = vand.u32 %v176, 127
      %v178 = vlaneseq
      %v179 = vshrl.u32 %v178, 7
      %v180 = vsub.s32 %v177, %v179
      %v181 = vrot.slane %v168, %v180
      %v182 = vlaneseq
      %v183 = vshrl.u32 %v182, 7
      %v184 = vsub.s32 %v177, %v183
      %v185 = vrot.slane %v169, %v184
      %v186 = vlaneseq
      %v187 = vshrl.u32 %v186, 7
      %v188 = vsub.s32 %v177, %v187
      %v189 = vrot.slane %v170, %v188
      %v190 = vlaneseq
      %v191 = vshrl.u32 %v190, 7
      %v192 = vsub.s32 %v177, %v191
      %v193 = vrot.slane %v171, %v192
      %v194 = vlaneseq
      %v195 = vshrl.u32 %v194, 7
      %v196 = vsub.s32 %v177, %v195
      %v197 = vrot.slane %v172, %v196
      %v198 = vlaneseq
      %v199 = vshrl.u32 %v198, 7
      %v200 = vsub.s32 %v177, %v199
      %v201 = vrot.slane %v173, %v200
      %v202 = vlaneseq
      %v203 = vshrl.u32 %v202, 7
      %v204 = vsub.s32 %v177, %v203
      %v205 = vrot.slane %v174, %v204
      %v206 = vlaneseq
      %v207 = vshrl.u32 %v206, 7
      %v208 = vsub.s32 %v177, %v207
      %v209 = vrot.slane %v175, %v208
      %vm210 = vcmask 1041409
      %v211 = vsel %vm210, %v185, %v181
      %vm212 = vcmask 1042434
      %v213 = vsel %vm212, %v189, %v211
      %vm214 = vcmask 1043459
      %v215 = vsel %vm214, %v193, %v213
      %vm216 = vcmask 1044484
      %v217 = vsel %vm216, %v197, %v215
      %vm218 = vcmask 1045509
      %v219 = vsel %vm218, %v201, %v217
      %vm220 = vcmask 1046534
      %v221 = vsel %vm220, %v205, %v219
      %vm222 = vcmask 1047559
      %v223 = vsel %vm222, %v209, %v221
      %v224 = vpack.c.b16 %v223, %v223
      %vm225 = vcmask 31744
      %v227 = vsel %vm225, %v224, 0
      %vm229 = vcmask 1041408
      %v231 = vsel %vm229, %v159, 0
      %233 = vmatprep.subr.bf16.mxu0 0
      %234 = vmatpush1.bf16.msra.mxu0 %v231
      %235 = vmatprep.subr.bf16.mxu0 0
      %236 = vmatpush1.bf16.msra.mxu0 0
      %237 = vmatprep.subr.bf16.mxu0 0
      %238 = vmatpush1.bf16.msra.mxu0 0
      %239 = vmatprep.subr.bf16.mxu0 0
      %240 = vmatpush1.bf16.msra.mxu0 0
      %241 = vmatprep.subr.bf16.mxu0 0
      %242 = vmatpush1.bf16.msra.mxu0 0
      %243 = vmatprep.subr.bf16.mxu0 0
      %244 = vmatpush1.bf16.msra.mxu0 0
      %245 = vmatprep.subr.bf16.mxu0 0
      %246 = vmatpush1.bf16.msra.mxu0 0
      %247 = vmatprep.subr.bf16.mxu0 0
      %248 = vmatpush1.bf16.msra.mxu0 0
      %249 = vmatprep.subr.bf16.mxu0 0
      %250 = vmatpush1.bf16.msra.mxu0 0
      %251 = vmatprep.subr.bf16.mxu0 0
      %252 = vmatpush1.bf16.msra.mxu0 0
      %253 = vmatprep.subr.bf16.mxu0 0
      %254 = vmatpush1.bf16.msra.mxu0 0
      %255 = vmatprep.subr.bf16.mxu0 0
      %256 = vmatpush1.bf16.msra.mxu0 0
      %257 = vmatprep.subr.bf16.mxu0 0
      %258 = vmatpush1.bf16.msra.mxu0 0
      %259 = vmatprep.subr.bf16.mxu0 0
      %260 = vmatpush1.bf16.msra.mxu0 0
      %261 = vmatprep.subr.bf16.mxu0 0
      %262 = vmatpush1.bf16.msra.mxu0 0
      %263 = vmatprep.subr.bf16.mxu0 0
      %264 = vmatpush1.bf16.msra.mxu0 0
      %265 = vmatprep.mubr.bf16.mxu0 0
      %266 = vmatmul.mubr.bf16.gmra.mrb[0].mxu0 %v227
      %v267 = vpop.f32.mrb[0].mxu0
      %v268 = vadd.f32 0.0, %v267
      %v269 = vpop.f32.mrb[0].mxu0
      %v270 = vpop.f32.mrb[0].mxu0
      %v271 = vpop.f32.mrb[0].mxu0
      %272 = vdwg.mxu0
      %v273 = vpack.c.bf16 %v268, %v268
      %v274 = vld [vmem:[#allocation6] sm:$0xf]
      %v275 = vld [vmem:[#allocation6 + $0x4] sm:$0xf]
      %v276 = vld [vmem:[#allocation6 + $0x8] sm:$0xf]
      %v277 = vld [vmem:[#allocation6 + $0xc] sm:$0xf]
      %v278 = vld [vmem:[#allocation6 + $0x10] sm:$0xf]
      %v279 = vld [vmem:[#allocation6 + $0x14] sm:$0xf]
      %v280 = vld [vmem:[#allocation6 + $0x18] sm:$0xf]
      %v281 = vld [vmem:[#allocation6 + $0x1c] sm:$0xf]
      %v282 = vld [vmem:[#allocation6 + $0x20] sm:$0xf]
      %v283 = vld [vmem:[#allocation6 + $0x24] sm:$0xf]
      %v284 = vld [vmem:[#allocation6 + $0x28] sm:$0xf]
      %v285 = vld [vmem:[#allocation6 + $0x2c] sm:$0xf]
      %v286 = vld [vmem:[#allocation6 + $0x30] sm:$0xf]
      %v287 = vld [vmem:[#allocation6 + $0x34] sm:$0xf]
      %v288 = vld [vmem:[#allocation6 + $0x38] sm:$0xf]
      %v289 = vld [vmem:[#allocation6 + $0x3c] sm:$0xf]
      %v290 = vld [vmem:[%s3] sm:$0x1]
      %v292 = vlaneseq
      %v293 = vshrl.u32 %v292, 7
      %v294 = vsub.s32 0, %v293
      %v295 = vrot.slane %v290, %v294
      %v313 = vunpack.c.l.b16 %v274
      %v314 = vunpack.c.l.b16 %v275
      %v315 = vunpack.c.l.b16 %v276
      %v316 = vunpack.c.l.b16 %v277
      %v317 = vunpack.c.l.b16 %v278
      %v318 = vunpack.c.l.b16 %v279
      %v319 = vunpack.c.l.b16 %v280
      %v320 = vunpack.c.l.b16 %v281
      %v321 = vunpack.c.l.b16 %v282
      %v322 = vunpack.c.l.b16 %v283
      %v323 = vunpack.c.l.b16 %v284
      %v324 = vunpack.c.l.b16 %v285
      %v325 = vunpack.c.l.b16 %v286
      %v326 = vunpack.c.l.b16 %v287
      %v327 = vunpack.c.l.b16 %v288
      %v328 = vunpack.c.l.b16 %v289
      %v329 = vpack.c.b16 %v314, %v313
      %v330 = vpack.c.b16 %v316, %v315
      %v331 = vpack.c.b16 %v318, %v317
      %v332 = vpack.c.b16 %v320, %v319
      %v333 = vpack.c.b16 %v322, %v321
      %v334 = vpack.c.b16 %v324, %v323
      %v335 = vpack.c.b16 %v326, %v325
      %v336 = vpack.c.b16 %v328, %v327
      %345 = vmatprep.subr.bf16.mxu0 0
      %346 = vmatpush1.bf16.msra.mxu0 %v329
      %347 = vmatprep.subr.bf16.mxu0 0
      %348 = vmatpush1.bf16.msra.mxu0 %v330
      %349 = vmatprep.subr.bf16.mxu0 0
      %350 = vmatpush1.bf16.msra.mxu0 %v331
      %351 = vmatprep.subr.bf16.mxu0 0
      %352 = vmatpush1.bf16.msra.mxu0 %v332
      %353 = vmatprep.subr.bf16.mxu0 0
      %354 = vmatpush1.bf16.msra.mxu0 %v333
      %355 = vmatprep.subr.bf16.mxu0 0
      %356 = vmatpush1.bf16.msra.mxu0 %v334
      %357 = vmatprep.subr.bf16.mxu0 0
      %358 = vmatpush1.bf16.msra.mxu0 %v335
      %359 = vmatprep.subr.bf16.mxu0 0
      %360 = vmatpush1.bf16.msra.mxu0 %v336
      %361 = vmatprep.subr.bf16.mxu0 0
      %362 = vmatpush1.bf16.msra.mxu0 0
      %363 = vmatprep.subr.bf16.mxu0 0
      %364 = vmatpush1.bf16.msra.mxu0 0
      %365 = vmatprep.subr.bf16.mxu0 0
      %366 = vmatpush1.bf16.msra.mxu0 0
      %367 = vmatprep.subr.bf16.mxu0 0
      %368 = vmatpush1.bf16.msra.mxu0 0
      %369 = vmatprep.subr.bf16.mxu0 0
      %370 = vmatpush1.bf16.msra.mxu0 0
      %371 = vmatprep.subr.bf16.mxu0 0
      %372 = vmatpush1.bf16.msra.mxu0 0
      %373 = vmatprep.subr.bf16.mxu0 0
      %374 = vmatpush1.bf16.msra.mxu0 0
      %375 = vmatprep.subr.bf16.mxu0 0
      %376 = vmatpush1.bf16.msra.mxu0 0
      %377 = vmatprep.mubr.bf16.mxu0 0
      %378 = vmatmul.mubr.bf16.gmra.mrb[0].mxu0 %v273
      %v379 = vpop.f32.mrb[0].mxu0
      %v380 = vadd.f32 %v295, %v379
      %v381 = vpop.f32.mrb[0].mxu0
      %v382 = vpop.f32.mrb[0].mxu0
      %v383 = vpop.f32.mrb[0].mxu0
      %384 = vdwg.mxu0
      %385 = vst [vmem:[#allocation8] sm:$0xff] %v380
    $region33: #{tpu_custom_call.1} parent=1 // pred_fallthru
      _
    // Predicated region
    $region34: #{tpu_custom_call.1} parent=1 // pred_check
      _
    $region35: #{tpu_custom_call.1} parent=1 // pred_check_branch
      %387 = sbr.rel (0) target = $region37
    $region36: #{tpu_custom_call.1} parent=1 // pred_region
      %s389 = ssub.s32 128, 128
      %390 = vsyncadd [#allocation5], %s389
      %s392 = sshll.u32 [#allocation8], 4
      %s393 = int_to_ptr.vmem [resolvable:$true] %s392
      %395 = dma.vmem_to_hbm [thread:$0]  %s393, 128, %s4, [#allocation5]
    $region37: #{tpu_custom_call.1} parent=1 // pred_fallthru
      _
    // Predicated region
    $region38: #{tpu_custom_call.1} parent=1 // pred_check
      _
    $region39: #{tpu_custom_call.1} parent=1 // pred_check_branch
      %397 = sbr.rel (0) target = $region41
    $region40: #{tpu_custom_call.1} parent=1 // pred_region
      %398 = dma.done [#allocation5], 128
    $region41: #{tpu_custom_call.1} parent=1 // pred_fallthru
      _
    %399 = vsyncpa [#allocation4], 1
    %400 = vsyncpa [#allocation7], 1
    %401 = vsyncpa [#allocation5], 1

</llo_original>
